<compile_context>
chip_gen: v5e
topology: v5e:2x2
jax: 0.10.0
libtpu: 0.0.40
codegen_flags: <defaults>
</compile_context>

<pallas_src>
import jax
import jax.numpy as jnp
from jax import lax
from jax.experimental import pallas as pl
from jax.experimental.pallas import tpu as pltpu

EPS = 1e-5     # nn.BatchNorm1d default eps
OUT_PAD = 8    # pad the 3-wide output to 8 columns (16x fewer bytes than 128-lane pad)


def fire_regressor_kernel(x_ref, w1_ref, b1_ref, w2_ref, b2_ref,
                          w3_ref, b3_ref, w4t_ref, b4_ref, o_ref):
    """One batch tile: 4 bf16 MXU matmuls (f32 accumulate) + f32 epilogue on VPU/EUP."""

    def linear_relu(h_bf16, w_ref, b_ref):
        y = jnp.dot(h_bf16, w_ref[...], preferred_element_type=jnp.float32)
        y = y + b_ref[...]                 # folded (BN + bias), f32
        return jnp.maximum(y, 0.0)         # ReLU in f32 (v5e VPU has no bf16 path)

    x_bf16 = x_ref[...].astype(jnp.bfloat16)                    # in-kernel cast (VPU pack)
    h = linear_relu(x_bf16, w1_ref, b1_ref)                     # dropout1: identity
    h = linear_relu(h.astype(jnp.bfloat16), w2_ref, b2_ref)     # dropout2: identity
    h = linear_relu(h.astype(jnp.bfloat16), w3_ref, b3_ref)     # dropout3: identity
    # Output layer with pre-transposed weights: (TB,64) x (8,64)^T -> (TB,8).
    logits = lax.dot_general(
        h.astype(jnp.bfloat16), w4t_ref[...],
        dimension_numbers=(((1,), (1,)), ((), ())),
        preferred_element_type=jnp.float32) + b4_ref[...]
    o_ref[...] = jax.nn.sigmoid(logits).astype(jnp.bfloat16)    # bf16 store: half the HBM bytes


def init_params(key, input_size):
    """Deterministic PyTorch-style init: Linear ~ U(-1/sqrt(fan_in), 1/sqrt(fan_in)),
    BatchNorm gamma=1, beta=0, running_mean=0, running_var=1."""
    sizes = [(input_size, 256), (256, 128), (128, 64), (64, 3)]
    params = {}
    keys = jax.random.split(key, 2 * len(sizes))
    for i, (fin, fout) in enumerate(sizes):
        bound = 1.0 / (fin ** 0.5)
        params[f"w{i + 1}"] = jax.random.uniform(
            keys[2 * i], (fin, fout), jnp.float32, -bound, bound)
        params[f"b{i + 1}"] = jax.random.uniform(
            keys[2 * i + 1], (1, fout), jnp.float32, -bound, bound)
    for i, (_, fout) in enumerate(sizes[:3]):
        params[f"g{i + 1}"] = jnp.ones((1, fout), jnp.float32)       # gamma
        params[f"beta{i + 1}"] = jnp.zeros((1, fout), jnp.float32)   # beta
        params[f"m{i + 1}"] = jnp.zeros((1, fout), jnp.float32)      # running_mean
        params[f"v{i + 1}"] = jnp.ones((1, fout), jnp.float32)       # running_var
    return params


def fold_params(params):
    """Fold eval-mode BN (and bias) into the weights; cast matmul operands to bf16;
    store the output layer pre-transposed and zero-padded from 3 to OUT_PAD rows."""
    folded = {}
    for i in range(1, 4):
        scale = params[f"g{i}"] * jax.lax.rsqrt(params[f"v{i}"] + EPS)     # (1, fout)
        folded[f"w{i}"] = (params[f"w{i}"] * scale).astype(jnp.bfloat16)
        folded[f"b{i}"] = ((params[f"b{i}"] - params[f"m{i}"]) * scale
                           + params[f"beta{i}"]).astype(jnp.float32)
    k4 = params["w4"].shape[0]                                   # 64
    w4t = jnp.zeros((OUT_PAD, k4), jnp.float32)                  # (8, 64), rows 3..7 zero
    w4t = w4t.at[:3, :].set(params["w4"].T)
    b4 = jnp.zeros((1, OUT_PAD), jnp.float32).at[:, :3].set(params["b4"])
    folded["w4t"] = w4t.astype(jnp.bfloat16)
    folded["b4"] = b4
    return folded


def fire_regressor_forward(x, folded, *, tb=2048):
    """x: (B, F) f32.  Returns (B, 3) f32 probabilities."""
    B, F = x.shape
    # Batch tile: multiple of 8 (sublane), capped at tb; weights stay VMEM-resident.
    TB = min(tb, ((B + 7) // 8) * 8)
    B_pad = pl.cdiv(B, TB) * TB
    if B_pad != B:
        x = jnp.pad(x, ((0, B_pad - B), (0, 0)))   # only pad the ragged last block

    const2 = lambda i: (0, 0)
    out = pl.pallas_call(
        fire_regressor_kernel,
        out_shape=jax.ShapeDtypeStruct((B_pad, OUT_PAD), jnp.bfloat16),
        grid=(B_pad // TB,),
        in_specs=[
            pl.BlockSpec((TB, F), lambda i: (i, 0)),           # x: streamed per tile (f32)
            pl.BlockSpec(folded["w1"].shape, const2),          # weights/biases: resident
            pl.BlockSpec(folded["b1"].shape, const2),
            pl.BlockSpec(folded["w2"].shape, const2),
            pl.BlockSpec(folded["b2"].shape, const2),
            pl.BlockSpec(folded["w3"].shape, const2),
            pl.BlockSpec(folded["b3"].shape, const2),
            pl.BlockSpec(folded["w4t"].shape, const2),
            pl.BlockSpec(folded["b4"].shape, const2),
        ],
        out_specs=pl.BlockSpec((TB, OUT_PAD), lambda i: (i, 0)),
        compiler_params=pltpu.CompilerParams(
            # On v7x, consider pltpu.CORE_PARALLEL if xprof shows one TC idle.
            dimension_semantics=("parallel",)),
    )(x, folded["w1"], folded["b1"], folded["w2"], folded["b2"],
      folded["w3"], folded["b3"], folded["w4t"], folded["b4"])
    return out[:B, :3].astype(jnp.float32)


def fire_regressor_ref(x, params):
    """Pure-JAX f32 reference (unfused BN, eval mode) for correctness check."""
    h = x
    for i in range(1, 4):
        y = h @ params[f"w{i}"] + params[f"b{i}"]
        y = (y - params[f"m{i}"]) * jax.lax.rsqrt(params[f"v{i}"] + EPS)
        y = y * params[f"g{i}"] + params[f"beta{i}"]
        h = jnp.maximum(y, 0.0)
    return jax.nn.sigmoid(h @ params["w4"] + params["b4"])


if __name__ == "__main__":
    key = jax.random.PRNGKey(0)
    k_param, k_x = jax.random.split(key)

    batch = 8
    input_size = 16   # small feature vector (e.g. weather/terrain features)

    params = init_params(k_param, input_size)
    folded = fold_params(params)
    x = jax.random.normal(k_x, (batch, input_size), jnp.float32)

    out = fire_regressor_forward(x, folded)
    out = jax.block_until_ready(out)

    ref = fire_regressor_ref(x, params)
    assert out.shape == (batch, 3), out.shape
    # bf16 matmuls + folded BN + bf16 output store -> loosen tolerance vs pure-f32 reference.
    assert jnp.allclose(out, ref, atol=2e-2, rtol=0.0), (
        "mismatch vs reference, max abs diff = %g" % float(jnp.max(jnp.abs(out - ref))))

    print("KERNEL_OK")
</pallas_src>

<mosaic_0001>
module attributes {stable_mosaic.version = 11 : i64} {
  func.func @fire_regressor_kernel(%arg0: i32, %arg1: memref<8x16xf32, #tpu.memory_space<vmem>>, %arg2: memref<16x256xbf16, #tpu.memory_space<vmem>>, %arg3: memref<1x256xf32, #tpu.memory_space<vmem>>, %arg4: memref<256x128xbf16, #tpu.memory_space<vmem>>, %arg5: memref<1x128xf32, #tpu.memory_space<vmem>>, %arg6: memref<128x64xbf16, #tpu.memory_space<vmem>>, %arg7: memref<1x64xf32, #tpu.memory_space<vmem>>, %arg8: memref<8x64xbf16, #tpu.memory_space<vmem>>, %arg9: memref<1x8xf32, #tpu.memory_space<vmem>>, %arg10: memref<8x8xbf16, #tpu.memory_space<vmem>>) attributes {dimension_semantics = [#tpu.dimension_semantics<parallel>], iteration_bounds = array<i64: 1>, scalar_prefetch = 0 : i64, scratch_operands = 0 : i64, tpu.core_type = #tpu.core_type<tc>, window_params = [{transform_indices = @transform_0, window_bounds = array<i64: 8, 16>}, {pipeline_mode = #tpu.pipeline_mode<synchronous>, transform_indices = @transform_1, window_bounds = array<i64: 16, 256>}, {pipeline_mode = #tpu.pipeline_mode<synchronous>, transform_indices = @transform_2, window_bounds = array<i64: 1, 256>}, {pipeline_mode = #tpu.pipeline_mode<synchronous>, transform_indices = @transform_3, window_bounds = array<i64: 256, 128>}, {pipeline_mode = #tpu.pipeline_mode<synchronous>, transform_indices = @transform_4, window_bounds = array<i64: 1, 128>}, {pipeline_mode = #tpu.pipeline_mode<synchronous>, transform_indices = @transform_5, window_bounds = array<i64: 128, 64>}, {pipeline_mode = #tpu.pipeline_mode<synchronous>, transform_indices = @transform_6, window_bounds = array<i64: 1, 64>}, {pipeline_mode = #tpu.pipeline_mode<synchronous>, transform_indices = @transform_7, window_bounds = array<i64: 8, 64>}, {pipeline_mode = #tpu.pipeline_mode<synchronous>, transform_indices = @transform_8, window_bounds = array<i64: 1, 8>}, {transform_indices = @transform_9, window_bounds = array<i64: 8, 8>}]} {
    %c0 = arith.constant 0 : index
    %c0_0 = arith.constant 0 : index
    %0 = vector.load %arg1[%c0, %c0_0] : memref<8x16xf32, #tpu.memory_space<vmem>>, vector<8x16xf32>
    %1 = arith.truncf %0 : vector<8x16xf32> to vector<8x16xbf16>
    %c0_1 = arith.constant 0 : index
    %c0_2 = arith.constant 0 : index
    %2 = vector.load %arg2[%c0_1, %c0_2] : memref<16x256xbf16, #tpu.memory_space<vmem>>, vector<16x256xbf16>
    %cst = arith.constant dense<0.000000e+00> : vector<8x256xf32>
    %3 = tpu.matmul %1, %2, %cst {dimension_numbers = #tpu.dot_dimension_numbers<[1], [0], [0], [1], [0, 0, 1, 1], [], []>} : vector<8x16xbf16>, vector<16x256xbf16>, vector<8x256xf32> -> vector<8x256xf32>
    %c0_3 = arith.constant 0 : index
    %c0_4 = arith.constant 0 : index
    %4 = vector.load %arg3[%c0_3, %c0_4] : memref<1x256xf32, #tpu.memory_space<vmem>>, vector<1x256xf32>
    %5 = vector.broadcast %4 : vector<1x256xf32> to vector<8x256xf32>
    %6 = arith.addf %3, %5 : vector<8x256xf32>
    %cst_5 = arith.constant 0.000000e+00 : f32
    %7 = vector.broadcast %cst_5 : f32 to vector<8x256xf32>
    %8 = arith.maximumf %6, %7 : vector<8x256xf32>
    %9 = arith.truncf %8 : vector<8x256xf32> to vector<8x256xbf16>
    %c0_6 = arith.constant 0 : index
    %c0_7 = arith.constant 0 : index
    %10 = vector.load %arg4[%c0_6, %c0_7] : memref<256x128xbf16, #tpu.memory_space<vmem>>, vector<256x128xbf16>
    %cst_8 = arith.constant dense<0.000000e+00> : vector<8x128xf32>
    %11 = tpu.matmul %9, %10, %cst_8 {dimension_numbers = #tpu.dot_dimension_numbers<[1], [0], [0], [1], [0, 0, 1, 1], [], []>} : vector<8x256xbf16>, vector<256x128xbf16>, vector<8x128xf32> -> vector<8x128xf32>
    %c0_9 = arith.constant 0 : index
    %c0_10 = arith.constant 0 : index
    %12 = vector.load %arg5[%c0_9, %c0_10] : memref<1x128xf32, #tpu.memory_space<vmem>>, vector<1x128xf32>
    %13 = vector.broadcast %12 : vector<1x128xf32> to vector<8x128xf32>
    %14 = arith.addf %11, %13 : vector<8x128xf32>
    %cst_11 = arith.constant 0.000000e+00 : f32
    %15 = vector.broadcast %cst_11 : f32 to vector<8x128xf32>
    %16 = arith.maximumf %14, %15 : vector<8x128xf32>
    %17 = arith.truncf %16 : vector<8x128xf32> to vector<8x128xbf16>
    %c0_12 = arith.constant 0 : index
    %c0_13 = arith.constant 0 : index
    %18 = vector.load %arg6[%c0_12, %c0_13] : memref<128x64xbf16, #tpu.memory_space<vmem>>, vector<128x64xbf16>
    %cst_14 = arith.constant dense<0.000000e+00> : vector<8x64xf32>
    %19 = tpu.matmul %17, %18, %cst_14 {dimension_numbers = #tpu.dot_dimension_numbers<[1], [0], [0], [1], [0, 0, 1, 1], [], []>} : vector<8x128xbf16>, vector<128x64xbf16>, vector<8x64xf32> -> vector<8x64xf32>
    %c0_15 = arith.constant 0 : index
    %c0_16 = arith.constant 0 : index
    %20 = vector.load %arg7[%c0_15, %c0_16] : memref<1x64xf32, #tpu.memory_space<vmem>>, vector<1x64xf32>
    %21 = vector.broadcast %20 : vector<1x64xf32> to vector<8x64xf32>
    %22 = arith.addf %19, %21 : vector<8x64xf32>
    %cst_17 = arith.constant 0.000000e+00 : f32
    %23 = vector.broadcast %cst_17 : f32 to vector<8x64xf32>
    %24 = arith.maximumf %22, %23 : vector<8x64xf32>
    %25 = arith.truncf %24 : vector<8x64xf32> to vector<8x64xbf16>
    %c0_18 = arith.constant 0 : index
    %c0_19 = arith.constant 0 : index
    %26 = vector.load %arg8[%c0_18, %c0_19] : memref<8x64xbf16, #tpu.memory_space<vmem>>, vector<8x64xbf16>
    %cst_20 = arith.constant dense<0.000000e+00> : vector<8x8xf32>
    %27 = tpu.matmul %25, %26, %cst_20 {dimension_numbers = #tpu.dot_dimension_numbers<[1], [1], [0], [0], [0, 0, 1, 0], [], []>} : vector<8x64xbf16>, vector<8x64xbf16>, vector<8x8xf32> -> vector<8x8xf32>
    %c0_21 = arith.constant 0 : index
    %c0_22 = arith.constant 0 : index
    %28 = vector.load %arg9[%c0_21, %c0_22] : memref<1x8xf32, #tpu.memory_space<vmem>>, vector<1x8xf32>
    %29 = vector.broadcast %28 : vector<1x8xf32> to vector<8x8xf32>
    %30 = arith.addf %27, %29 : vector<8x8xf32>
    %31 = arith.negf %30 : vector<8x8xf32>
    %32 = math.exp %31 : vector<8x8xf32>
    %cst_23 = arith.constant 1.000000e+00 : f32
    %33 = vector.broadcast %cst_23 : f32 to vector<8x8xf32>
    %34 = arith.addf %33, %32 : vector<8x8xf32>
    %35 = arith.divf %33, %34 : vector<8x8xf32>
    %36 = arith.truncf %35 : vector<8x8xf32> to vector<8x8xbf16>
    %c0_24 = arith.constant 0 : index
    %c0_25 = arith.constant 0 : index
    %37 = vector.load %arg10[%c0_24, %c0_25] : memref<8x8xbf16, #tpu.memory_space<vmem>>, vector<8x8xbf16>
    tpu.vector_store %arg10[%c0_24, %c0_25], %36 {strides = array<i32>} : memref<8x8xbf16, #tpu.memory_space<vmem>>, vector<8x8xbf16>,
    return
  }
  func.func @transform_0(%arg0: i32) -> (i32, i32) {
    %c0_i32 = arith.constant 0 : i32
    %c0_i32_0 = arith.constant 0 : i32
    return %arg0, %c0_i32 : i32, i32
  }
  func.func @transform_1(%arg0: i32) -> (i32, i32) {
    %c0_i32 = arith.constant 0 : i32
    %c0_i32_0 = arith.constant 0 : i32
    %c0_i32_1 = arith.constant 0 : i32
    return %c0_i32, %c0_i32_0 : i32, i32
  }
  func.func @transform_2(%arg0: i32) -> (i32, i32) {
    %c0_i32 = arith.constant 0 : i32
    %c0_i32_0 = arith.constant 0 : i32
    %c0_i32_1 = arith.constant 0 : i32
    return %c0_i32, %c0_i32_0 : i32, i32
  }
  func.func @transform_3(%arg0: i32) -> (i32, i32) {
    %c0_i32 = arith.constant 0 : i32
    %c0_i32_0 = arith.constant 0 : i32
    %c0_i32_1 = arith.constant 0 : i32
    return %c0_i32, %c0_i32_0 : i32, i32
  }
  func.func @transform_4(%arg0: i32) -> (i32, i32) {
    %c0_i32 = arith.constant 0 : i32
    %c0_i32_0 = arith.constant 0 : i32
    %c0_i32_1 = arith.constant 0 : i32
    return %c0_i32, %c0_i32_0 : i32, i32
  }
  func.func @transform_5(%arg0: i32) -> (i32, i32) {
    %c0_i32 = arith.constant 0 : i32
    %c0_i32_0 = arith.constant 0 : i32
    %c0_i32_1 = arith.constant 0 : i32
    return %c0_i32, %c0_i32_0 : i32, i32
  }
  func.func @transform_6(%arg0: i32) -> (i32, i32) {
    %c0_i32 = arith.constant 0 : i32
    %c0_i32_0 = arith.constant 0 : i32
    %c0_i32_1 = arith.constant 0 : i32
    return %c0_i32, %c0_i32_0 : i32, i32
  }
  func.func @transform_7(%arg0: i32) -> (i32, i32) {
    %c0_i32 = arith.constant 0 : i32
    %c0_i32_0 = arith.constant 0 : i32
    %c0_i32_1 = arith.constant 0 : i32
    return %c0_i32, %c0_i32_0 : i32, i32
  }
  func.func @transform_8(%arg0: i32) -> (i32, i32) {
    %c0_i32 = arith.constant 0 : i32
    %c0_i32_0 = arith.constant 0 : i32
    %c0_i32_1 = arith.constant 0 : i32
    return %c0_i32, %c0_i32_0 : i32, i32
  }
  func.func @transform_9(%arg0: i32) -> (i32, i32) {
    %c0_i32 = arith.constant 0 : i32
    %c0_i32_0 = arith.constant 0 : i32
    return %arg0, %c0_i32 : i32, i32
  }
}

</mosaic_0001>

<llo_original>
// kernel: tpu_custom_call.1
$region0: #{tpu_custom_call.1}
  #allocation0 [shape = 'u32[]', space=smem, size = 0x4, offset = 0x4, fixed_abs, tag = 'smem constant byte address 0x4 - core index']
  #allocation1 [shape = 'u32[72,128]{1,0:T(1,128)}', space=vmem, size = 0x9000, scoped, tag = 'internal scratch']
  %s0 = inlined_call_operand.vmem [shape: f32[8,16], index: 0, kind: input, shape index: {}]
  %s1 = inlined_call_operand.vmem [shape: bf16[16,256], index: 1, kind: input, shape index: {}]
  %s2 = inlined_call_operand.vmem [shape: f32[1,256], index: 2, kind: input, shape index: {}]
  %s3 = inlined_call_operand.hbm [shape: bf16[256,128], index: 3, kind: input, shape index: {}]
  %s4 = inlined_call_operand.vmem [shape: f32[1,128], index: 4, kind: input, shape index: {}]
  %s5 = inlined_call_operand.vmem [shape: bf16[128,64], index: 5, kind: input, shape index: {}]
  %s6 = inlined_call_operand.vmem [shape: f32[1,64], index: 6, kind: input, shape index: {}]
  %s7 = inlined_call_operand.vmem [shape: bf16[8,64], index: 7, kind: input, shape index: {}]
  %s8 = inlined_call_operand.vmem [shape: f32[1,8], index: 8, kind: input, shape index: {}]
  %s9 = inlined_call_operand.hbm [shape: bf16[8,8], index: 9, kind: output, shape index: {}]
  %s10 = sld [smem:[#allocation0]]
  $region50: #{tpu_custom_call.1} parent=0
    _
  %s12 = ssub.s32 1, %s10
  %s13 = scalar_select 0, %s12, %s10
  $region1: #{tpu_custom_call.1} parent=0
    #allocation2 [shape = 'u8[65536]{0}', space=vmem, size = 0x10000, scoped, tag = 'input window, operand 3, single buffered']
    #allocation3 [shape = 's32[1]{0}', space=sflag, size = 0x4, scoped, tag = 'scoped memory for tpu_custom_call.1']
    #allocation4 [shape = 's32[1]{0}', space=sflag, size = 0x4, scoped, tag = 'scoped memory for tpu_custom_call.1']
    #allocation5 [shape = 'u8[2048]{0}', space=vmem, size = 0x800, scoped, tag = 'output window, operand 0, single buffered']
    %14 = vsyncpa [#allocation3], 0
    %15 = vsyncpa [#allocation4], 0
    // Predicated region
    $region2: #{tpu_custom_call.1} parent=1 // pred_check
      _
    $region3: #{tpu_custom_call.1} parent=1 // pred_check_branch
      %17 = sbr.rel (0) target = $region5
    $region4: #{tpu_custom_call.1} parent=1 // pred_region
      _
    $region5: #{tpu_custom_call.1} parent=1 // pred_fallthru
      _
    // Predicated region
    $region6: #{tpu_custom_call.1} parent=1 // pred_check
      _
    $region7: #{tpu_custom_call.1} parent=1 // pred_check_branch
      %19 = sbr.rel (0) target = $region9
    $region8: #{tpu_custom_call.1} parent=1 // pred_region
      _
    $region9: #{tpu_custom_call.1} parent=1 // pred_fallthru
      _
    // Predicated region
    $region10: #{tpu_custom_call.1} parent=1 // pred_check
      _
    $region11: #{tpu_custom_call.1} parent=1 // pred_check_branch
      %21 = sbr.rel (0) target = $region13
    $region12: #{tpu_custom_call.1} parent=1 // pred_region
      _
    $region13: #{tpu_custom_call.1} parent=1 // pred_fallthru
      _
    // Predicated region
    $region14: #{tpu_custom_call.1} parent=1 // pred_check
      _
    $region15: #{tpu_custom_call.1} parent=1 // pred_check_branch
      %23 = sbr.rel (0) target = $region17
    $region16: #{tpu_custom_call.1} parent=1 // pred_region
      %25 = vsyncadd [#allocation3], 0
      %s26 = sshll.u32 %s3, 4
      %s27 = int_to_ptr.hbm [resolvable:$true] %s26
      %s28 = sshll.u32 [#allocation2], 4
      %s29 = int_to_ptr.vmem [resolvable:$true] %s28
      %34 = dma.hbm_to_vmem [thread:$0]  %s27, 2048, %s29, [#allocation3], 64, 64, 4
    $region17: #{tpu_custom_call.1} parent=1 // pred_fallthru
      _
    // Predicated region
    $region18: #{tpu_custom_call.1} parent=1 // pred_check
      _
    $region19: #{tpu_custom_call.1} parent=1 // pred_check_branch
      %36 = sbr.rel (0) target = $region21
    $region20: #{tpu_custom_call.1} parent=1 // pred_region
      _
    $region21: #{tpu_custom_call.1} parent=1 // pred_fallthru
      _
    // Predicated region
    $region22: #{tpu_custom_call.1} parent=1 // pred_check
      _
    $region23: #{tpu_custom_call.1} parent=1 // pred_check_branch
      %38 = sbr.rel (0) target = $region25
    $region24: #{tpu_custom_call.1} parent=1 // pred_region
      _
    $region25: #{tpu_custom_call.1} parent=1 // pred_fallthru
      _
    // Predicated region
    $region26: #{tpu_custom_call.1} parent=1 // pred_check
      _
    $region27: #{tpu_custom_call.1} parent=1 // pred_check_branch
      %40 = sbr.rel (0) target = $region29
    $region28: #{tpu_custom_call.1} parent=1 // pred_region
      _
    $region29: #{tpu_custom_call.1} parent=1 // pred_fallthru
      _
    // Predicated region
    $region30: #{tpu_custom_call.1} parent=1 // pred_check
      _
    $region31: #{tpu_custom_call.1} parent=1 // pred_check_branch
      %42 = sbr.rel (0) target = $region33
    $region32: #{tpu_custom_call.1} parent=1 // pred_region
      _
    $region33: #{tpu_custom_call.1} parent=1 // pred_fallthru
      _
    // Predicated region
    $region34: #{tpu_custom_call.1} parent=1 // pred_check
      _
    $region35: #{tpu_custom_call.1} parent=1 // pred_check_branch
      %44 = sbr.rel (0) target = $region37
    $region36: #{tpu_custom_call.1} parent=1 // pred_region
      _
    $region37: #{tpu_custom_call.1} parent=1 // pred_fallthru
      _
    // Predicated region
    $region38: #{tpu_custom_call.1} parent=1 // pred_check
      _
    $region39: #{tpu_custom_call.1} parent=1 // pred_check_branch
      %46 = sbr.rel (0) target = $region41
    $region40: #{tpu_custom_call.1} parent=1 // pred_region
      %48 = dma.done [#allocation3], 2048
    $region41: #{tpu_custom_call.1} parent=1 // pred_fallthru
      _
    %v50 = vld [vmem:[%s0] sm:$0xff]
    %v51 = vpack.c.bf16 %v50, %v50
    %v52 = vld [vmem:[%s1] sm:$0xff]
    %v53 = vld [vmem:[%s1 + $0x8] sm:$0xff]
    %v54 = vld [vmem:[%s2] sm:$0x3]
    %v56 = vperm.slane %v54, 0
    %v57 = vperm.slane %v54, 1
    %v62 = vunpack.c.l.b16 %v52
    %v63 = vunpack.c.h.b16 %v52
    %v64 = vunpack.c.l.b16 %v53
    %v65 = vunpack.c.h.b16 %v53
    %v66 = vpack.c.b16 %v64, %v62
    %v67 = vpack.c.b16 %v65, %v63
    %vm70 = vcmask 130048
    %v72 = vsel %vm70, %v51, 0
    %74 = vmatpush.bf16.msra.mxu0 0
    %75 = vmatpush.bf16.msra.mxu0 0
    %76 = vmatpush.bf16.msra.mxu0 0
    %77 = vmatpush.bf16.msra.mxu0 0
    %78 = vmatpush.bf16.msra.mxu0 0
    %79 = vmatpush.bf16.msra.mxu0 0
    %80 = vmatpush.bf16.msra.mxu0 0
    %81 = vmatpush.bf16.msra.mxu0 %v66
    %82 = vmatmul.bf16.gmra.mxu0 %v72
    %v83 = vpop.f32.mrf.mxu0
    %v84 = vadd.f32 %v56, %v83
    %v85 = vpop.f32.mrf.mxu0
    %86 = vdwg.mxu0
    %87 = vmatpush.bf16.msra.mxu0 0
    %88 = vmatpush.bf16.msra.mxu0 0
    %89 = vmatpush.bf16.msra.mxu0 0
    %90 = vmatpush.bf16.msra.mxu0 0
    %91 = vmatpush.bf16.msra.mxu0 0
    %92 = vmatpush.bf16.msra.mxu0 0
    %93 = vmatpush.bf16.msra.mxu0 0
    %94 = vmatpush.bf16.msra.mxu0 %v67
    %95 = vmatmul.bf16.gmra.mxu0 %v72
    %v96 = vpop.f32.mrf.mxu0
    %v97 = vadd.f32 %v57, %v96
    %v98 = vpop.f32.mrf.mxu0
    %99 = vdwg.mxu0
    %v100 = vmax.f32 %v84, 0.0
    %v101 = vmax.f32 %v97, 0.0
    %v102 = vpack.c.bf16 %v100, %v100
    %v103 = vpack.c.bf16 %v101, %v101
    %v104 = vld [vmem:[#allocation2] sm:$0xf]
    %v105 = vld [vmem:[#allocation2 + $0x4] sm:$0xf]
    %v106 = vld [vmem:[#allocation2 + $0x8] sm:$0xf]
    %v107 = vld [vmem:[#allocation2 + $0xc] sm:$0xf]
    %v108 = vld [vmem:[#allocation2 + $0x10] sm:$0xf]
    %v109 = vld [vmem:[#allocation2 + $0x14] sm:$0xf]
    %v110 = vld [vmem:[#allocation2 + $0x18] sm:$0xf]
    %v111 = vld [vmem:[#allocation2 + $0x1c] sm:$0xf]
    %v112 = vld [vmem:[#allocation2 + $0x20] sm:$0xf]
    %v113 = vld [vmem:[#allocation2 + $0x24] sm:$0xf]
    %v114 = vld [vmem:[#allocation2 + $0x28] sm:$0xf]
    %v115 = vld [vmem:[#allocation2 + $0x2c] sm:$0xf]
    %v116 = vld [vmem:[#allocation2 + $0x30] sm:$0xf]
    %v117 = vld [vmem:[#allocation2 + $0x34] sm:$0xf]
    %v118 = vld [vmem:[#allocation2 + $0x38] sm:$0xf]
    %v119 = vld [vmem:[#allocation2 + $0x3c] sm:$0xf]
    %v120 = vld [vmem:[#allocation2 + $0x40] sm:$0xf]
    %v121 = vld [vmem:[#allocation2 + $0x44] sm:$0xf]
    %v122 = vld [vmem:[#allocation2 + $0x48] sm:$0xf]
    %v123 = vld [vmem:[#allocation2 + $0x4c] sm:$0xf]
    %v124 = vld [vmem:[#allocation2 + $0x50] sm:$0xf]
    %v125 = vld [vmem:[#allocation2 + $0x54] sm:$0xf]
    %v126 = vld [vmem:[#allocation2 + $0x58] sm:$0xf]
    %v127 = vld [vmem:[#allocation2 + $0x5c] sm:$0xf]
    %v128 = vld [vmem:[#allocation2 + $0x60] sm:$0xf]
    %v129 = vld [vmem:[#allocation2 + $0x64] sm:$0xf]
    %v130 = vld [vmem:[#allocation2 + $0x68] sm:$0xf]
    %v131 = vld [vmem:[#allocation2 + $0x6c] sm:$0xf]
    %v132 = vld [vmem:[#allocation2 + $0x70] sm:$0xf]
    %v133 = vld [vmem:[#allocation2 + $0x74] sm:$0xf]
    %v134 = vld [vmem:[#allocation2 + $0x78] sm:$0xf]
    %v135 = vld [vmem:[#allocation2 + $0x7c] sm:$0xf]
    %v136 = vld [vmem:[%s4] sm:$0x1]
    %v138 = vperm.slane %v136, 0
    %v172 = vunpack.c.l.b16 %v104
    %v173 = vunpack.c.l.b16 %v105
    %v174 = vunpack.c.l.b16 %v106
    %v175 = vunpack.c.l.b16 %v107
    %v176 = vunpack.c.l.b16 %v108
    %v177 = vunpack.c.l.b16 %v109
    %v178 = vunpack.c.l.b16 %v110
    %v179 = vunpack.c.l.b16 %v111
    %v180 = vunpack.c.l.b16 %v112
    %v181 = vunpack.c.l.b16 %v113
    %v182 = vunpack.c.l.b16 %v114
    %v183 = vunpack.c.l.b16 %v115
    %v184 = vunpack.c.l.b16 %v116
    %v185 = vunpack.c.l.b16 %v117
    %v186 = vunpack.c.l.b16 %v118
    %v187 = vunpack.c.l.b16 %v119
    %v188 = vunpack.c.l.b16 %v120
    %v189 = vunpack.c.l.b16 %v121
    %v190 = vunpack.c.l.b16 %v122
    %v191 = vunpack.c.l.b16 %v123
    %v192 = vunpack.c.l.b16 %v124
    %v193 = vunpack.c.l.b16 %v125
    %v194 = vunpack.c.l.b16 %v126
    %v195 = vunpack.c.l.b16 %v127
    %v196 = vunpack.c.l.b16 %v128
    %v197 = vunpack.c.l.b16 %v129
    %v198 = vunpack.c.l.b16 %v130
    %v199 = vunpack.c.l.b16 %v131
    %v200 = vunpack.c.l.b16 %v132
    %v201 = vunpack.c.l.b16 %v133
    %v202 = vunpack.c.l.b16 %v134
    %v203 = vunpack.c.l.b16 %v135
    %v204 = vpack.c.b16 %v173, %v172
    %v205 = vpack.c.b16 %v175, %v174
    %v206 = vpack.c.b16 %v177, %v176
    %v207 = vpack.c.b16 %v179, %v178
    %v208 = vpack.c.b16 %v181, %v180
    %v209 = vpack.c.b16 %v183, %v182
    %v210 = vpack.c.b16 %v185, %v184
    %v211 = vpack.c.b16 %v187, %v186
    %v212 = vpack.c.b16 %v189, %v188
    %v213 = vpack.c.b16 %v191, %v190
    %v214 = vpack.c.b16 %v193, %v192
    %v215 = vpack.c.b16 %v195, %v194
    %v216 = vpack.c.b16 %v197, %v196
    %v217 = vpack.c.b16 %v199, %v198
    %v218 = vpack.c.b16 %v201, %v200
    %v219 = vpack.c.b16 %v203, %v202
    %236 = vmatpush.bf16.msra.mxu0 %v211
    %237 = vmatpush.bf16.msra.mxu0 %v210
    %238 = vmatpush.bf16.msra.mxu0 %v209
    %239 = vmatpush.bf16.msra.mxu0 %v208
    %240 = vmatpush.bf16.msra.mxu0 %v207
    %241 = vmatpush.bf16.msra.mxu0 %v206
    %242 = vmatpush.bf16.msra.mxu0 %v205
    %243 = vmatpush.bf16.msra.mxu0 %v204
    %244 = vmatmul.bf16.gmra.mxu0 %v102
    %v245 = vpop.f32.mrf.mxu0
    %v246 = vadd.f32 %v138, %v245
    %v247 = vpop.f32.mrf.mxu0
    %248 = vdwg.mxu0
    %249 = vmatpush.bf16.msra.mxu0 %v219
    %250 = vmatpush.bf16.msra.mxu0 %v218
    %251 = vmatpush.bf16.msra.mxu0 %v217
    %252 = vmatpush.bf16.msra.mxu0 %v216
    %253 = vmatpush.bf16.msra.mxu0 %v215
    %254 = vmatpush.bf16.msra.mxu0 %v214
    %255 = vmatpush.bf16.msra.mxu0 %v213
    %256 = vmatpush.bf16.msra.mxu0 %v212
    %257 = vmatmul.bf16.gmra.mxu0 %v103
    %v258 = vpop.f32.mrf.mxu0
    %v259 = vadd.f32 %v246, %v258
    %v260 = vpop.f32.mrf.mxu0
    %261 = vdwg.mxu0
    %v262 = vmax.f32 %v259, 0.0
    %v263 = vpack.c.bf16 %v262, %v262
    %v264 = vld [vmem:[%s5] sm:$0xf]
    %v265 = vld [vmem:[%s5 + $0x4] sm:$0xf]
    %v266 = vld [vmem:[%s5 + $0x8] sm:$0xf]
    %v267 = vld [vmem:[%s5 + $0xc] sm:$0xf]
    %v268 = vld [vmem:[%s5 + $0x10] sm:$0xf]
    %v269 = vld [vmem:[%s5 + $0x14] sm:$0xf]
    %v270 = vld [vmem:[%s5 + $0x18] sm:$0xf]
    %v271 = vld [vmem:[%s5 + $0x1c] sm:$0xf]
    %v272 = vld [vmem:[%s5 + $0x20] sm:$0xf]
    %v273 = vld [vmem:[%s5 + $0x24] sm:$0xf]
    %v274 = vld [vmem:[%s5 + $0x28] sm:$0xf]
    %v275 = vld [vmem:[%s5 + $0x2c] sm:$0xf]
    %v276 = vld [vmem:[%s5 + $0x30] sm:$0xf]
    %v277 = vld [vmem:[%s5 + $0x34] sm:$0xf]
    %v278 = vld [vmem:[%s5 + $0x38] sm:$0xf]
    %v279 = vld [vmem:[%s5 + $0x3c] sm:$0xf]
    %v280 = vld [vmem:[%s6] sm:$0x1]
    %v282 = vperm.slane %v280, 0
    %v300 = vunpack.c.l.b16 %v264
    %v301 = vunpack.c.l.b16 %v265
    %v302 = vunpack.c.l.b16 %v266
    %v303 = vunpack.c.l.b16 %v267
    %v304 = vunpack.c.l.b16 %v268
    %v305 = vunpack.c.l.b16 %v269
    %v306 = vunpack.c.l.b16 %v270
    %v307 = vunpack.c.l.b16 %v271
    %v308 = vunpack.c.l.b16 %v272
    %v309 = vunpack.c.l.b16 %v273
    %v310 = vunpack.c.l.b16 %v274
    %v311 = vunpack.c.l.b16 %v275
    %v312 = vunpack.c.l.b16 %v276
    %v313 = vunpack.c.l.b16 %v277
    %v314 = vunpack.c.l.b16 %v278
    %v315 = vunpack.c.l.b16 %v279
    %v316 = vpack.c.b16 %v301, %v300
    %v317 = vpack.c.b16 %v303, %v302
    %v318 = vpack.c.b16 %v305, %v304
    %v319 = vpack.c.b16 %v307, %v306
    %v320 = vpack.c.b16 %v309, %v308
    %v321 = vpack.c.b16 %v311, %v310
    %v322 = vpack.c.b16 %v313, %v312
    %v323 = vpack.c.b16 %v315, %v314
    %332 = vmatpush.bf16.msra.mxu0 %v323
    %333 = vmatpush.bf16.msra.mxu0 %v322
    %334 = vmatpush.bf16.msra.mxu0 %v321
    %335 = vmatpush.bf16.msra.mxu0 %v320
    %336 = vmatpush.bf16.msra.mxu0 %v319
    %337 = vmatpush.bf16.msra.mxu0 %v318
    %338 = vmatpush.bf16.msra.mxu0 %v317
    %339 = vmatpush.bf16.msra.mxu0 %v316
    %340 = vmatmul.bf16.gmra.mxu0 %v263
    %v341 = vpop.f32.mrf.mxu0
    %v342 = vadd.f32 %v282, %v341
    %v343 = vpop.f32.mrf.mxu0
    %344 = vdwg.mxu0
    %v345 = vmax.f32 %v342, 0.0
    %v346 = vpack.c.bf16 %v345, %v345
    %v347 = vld [vmem:[%s7] sm:$0xf]
    %v348 = vld [vmem:[%s8] sm:$0x1]
    %v350 = vperm.slane %v348, 0
    %vm352 = vcmask 523264
    %v354 = vsel %vm352, %v346, 0
    %v357 = vsel %vm352, %v347, 0
    %359 = vmatpush.bf16.xpose.msra.mxu0 0
    %360 = vmatpush.bf16.xpose.msra.mxu0 0
    %361 = vmatpush.bf16.xpose.msra.mxu0 0
    %362 = vmatpush.bf16.xpose.msra.mxu0 0
    %363 = vmatpush.bf16.xpose.msra.mxu0 0
    %364 = vmatpush.bf16.xpose.msra.mxu0 0
    %365 = vmatpush.bf16.xpose.msra.mxu0 0
    %366 = vmatpush.bf16.xpose.msra.mxu0 %v357
    %367 = vmatmul.bf16.gmra.mxu0 %v354
    %v368 = vpop.f32.mrf.mxu0
    %v369 = vadd.f32 %v350, %v368
    %v370 = vpop.f32.mrf.mxu0
    %371 = vdwg.mxu0
    %v372 = vxor.u32 %v369, 2147483648
    %v373 = vmul.f32 %v372, 1.442695
    %v374 = vpow.pop %v373
    %v375 = vadd.f32 %v374, 1.0
    %v376 = vrcp.pop %v375
    %v377 = vmul.f32 %v375, %v376
    %v378 = vsub.f32 1.0, %v377
    %v379 = vmul.f32 %v376, %v378
    %v380 = vadd.f32 %v376, %v379
    %vm381 = vweird.f32 %v375
    %vm382 = vweird.f32 %v376
    %vm383 = vmor %vm381, %vm382
    %v384 = vsel %vm383, %v376, %v380
    %v385 = vand.u32 2147483647, %v375
    %vm386 = vcmp.eq.f32.partialorder %v385, 8.507059e+37
    %v387 = vand.u32 %v375, 2147483648
    %v388 = vor.u32 1.1754944e-38, %v387
    %v389 = vsel %vm386, %v388, %v384
    %v390 = vmul.f32 1.0, %v389
    %v391 = vpack.c.bf16 %v390, %v390
    %vm392 = vcmask 60416
    %393 = vst.msk [vmem:[#allocation5] sm:$0xf] %vm392, %v391
    // Predicated region
    $region42: #{tpu_custom_call.1} parent=1 // pred_check
      _
    $region43: #{tpu_custom_call.1} parent=1 // pred_check_branch
      %395 = sbr.rel (0) target = $region45
    $region44: #{tpu_custom_call.1} parent=1 // pred_region
      %397 = vsyncadd [#allocation4], 0
      %s399 = sshll.u32 [#allocation5], 4
      %s400 = int_to_ptr.vmem [resolvable:$true] %s399
      %s401 = sshll.u32 %s9, 4
      %s402 = int_to_ptr.hbm [resolvable:$true] %s401
      %404 = dma.vmem_to_hbm [thread:$0]  %s400, 64, %s402, [#allocation4]
    $region45: #{tpu_custom_call.1} parent=1 // pred_fallthru
      _
    // Predicated region
    $region46: #{tpu_custom_call.1} parent=1 // pred_check
      _
    $region47: #{tpu_custom_call.1} parent=1 // pred_check_branch
      %406 = sbr.rel (0) target = $region49
    $region48: #{tpu_custom_call.1} parent=1 // pred_region
      %408 = dma.done [#allocation4], 64
    $region49: #{tpu_custom_call.1} parent=1 // pred_fallthru
      _
    %409 = vsyncpa [#allocation3], 1
    %410 = vsyncpa [#allocation4], 1

</llo_original>
